<compile_context>
chip_gen: v5e
topology: v5e:2x2
jax: 0.10.0
libtpu: 0.0.40
codegen_flags: <defaults>
</compile_context>

<pallas_src>
import functools

import jax
import jax.numpy as jnp
from jax.experimental import pallas as pl
from jax.experimental.pallas import tpu as pltpu


# ---------------------------------------------------------------------------
# Backward Pallas kernel: grad_in = -lambd * grad_out
# ---------------------------------------------------------------------------
def _neg_scale_kernel(lambd, g_ref, o_ref):
    g = g_ref[...]
    # Scale in f32 so low-precision grads (bf16/fp8) see exact lambd, then cast back.
    o_ref[...] = (g.astype(jnp.float32) * jnp.float32(-lambd)).astype(o_ref.dtype)


_LANE_CHOICES = (2048, 1024, 512, 256, 128)   # lane-dense last-dim candidates
_TARGET_BLOCK_ELEMS = 512 * 1024              # ~2 MiB f32 per operand per block


def _neg_scale_pallas(g, lambd):
    orig_shape = g.shape
    flat = g.reshape(-1)
    n = flat.size

    # --- pick a lane-dense 2D slab (rows, cols) with cols a multiple of 128 ---
    cols = None
    for c in _LANE_CHOICES:
        if n % c == 0:
            cols = c
            break
    padded = 0
    if cols is None:
        # Awkward size: pad tail to a multiple of 128 lanes (tail discarded after).
        cols = 128
        padded = (-n) % cols
        flat = jnp.pad(flat, (0, padded))
    g2 = flat.reshape(-1, cols)
    rows = g2.shape[0]

    # --- tile rows: ~2 MiB blocks, (8,128)-divisible unless full-dim ---
    tile_rows = min(rows, max(1, _TARGET_BLOCK_ELEMS // cols))
    if tile_rows >= rows:
        tile_rows = rows                      # full dim: always legal
    else:
        tile_rows = max(8, (tile_rows // 8) * 8)
    grid_rows = pl.cdiv(rows, tile_rows)

    itemsize = jnp.dtype(g2.dtype).itemsize
    out = pl.pallas_call(
        functools.partial(_neg_scale_kernel, lambd),
        out_shape=jax.ShapeDtypeStruct(g2.shape, g2.dtype),
        grid=(grid_rows,),
        in_specs=[pl.BlockSpec((tile_rows, cols), lambda i: (i, 0))],
        out_specs=pl.BlockSpec((tile_rows, cols), lambda i: (i, 0)),
        input_output_aliases={0: 0},          # write the scaled grad in place
        compiler_params=pltpu.CompilerParams(
            dimension_semantics=("parallel",),          # shards across TCs on v7x
            vmem_limit_bytes=32 * 1024 * 1024,
        ),
        cost_estimate=pl.CostEstimate(
            flops=int(g2.size),
            transcendentals=0,
            bytes_accessed=int(2 * g2.size * itemsize),
        ),
    )(g2)

    out = out.reshape(-1)
    if padded:
        out = out[:n]
    return out.reshape(orig_shape)


# ---------------------------------------------------------------------------
# grad_reverse with custom VJP (matches torch.autograd.Function semantics)
# ---------------------------------------------------------------------------
@functools.partial(jax.custom_vjp, nondiff_argnums=(1,))
def grad_reverse(x, lambd=1.0):
    # Forward is a pure identity: no kernel, no copy (zero-cost).
    return x


def _grad_reverse_fwd(x, lambd):
    return x, None


def _grad_reverse_bwd(lambd, _residual, g):
    return (_neg_scale_pallas(g, lambd),)


grad_reverse.defvjp(_grad_reverse_fwd, _grad_reverse_bwd)


class GradReverseLayer:
    """JAX/Pallas equivalent of the PyTorch GradReverseLayer module."""

    def __init__(self, lambd: float = 1.0):
        self.lambd = lambd

    def __call__(self, x):
        return grad_reverse(x, self.lambd)


# ---------------------------------------------------------------------------
# Demo / self-test
# ---------------------------------------------------------------------------
if __name__ == "__main__":
    key = jax.random.PRNGKey(0)
    # NCHW, small shapes
    x = jax.random.normal(key, (2, 4, 16, 16), dtype=jnp.float32)

    layer = GradReverseLayer(lambd=0.5)

    # Forward: identity (no kernel on this path by design)
    y = jax.block_until_ready(layer(x))
    assert y.shape == x.shape and y.dtype == x.dtype
    assert jnp.allclose(y, x), "forward must be identity"

    # Backward: gradient reversal (-lambd * upstream grad) via the Pallas kernel
    loss_fn = lambda inp: jnp.sum(layer(inp) * 2.0)
    g = jax.block_until_ready(jax.grad(loss_fn)(x))
    assert jnp.allclose(g, jnp.full_like(x, -2.0 * 0.5)), "backward must be -lambd * grad"

    # Also exercise the jit path
    gj = jax.block_until_ready(jax.jit(jax.grad(loss_fn))(x))
    assert jnp.allclose(gj, g)

    print("KERNEL_OK")
</pallas_src>

<mosaic_0001>
module attributes {stable_mosaic.version = 11 : i64} {
  func.func @_neg_scale_kernel(%arg0: i32, %arg1: memref<1x2048xf32, #tpu.memory_space<vmem>>, %arg2: memref<1x2048xf32, #tpu.memory_space<vmem>>) attributes {dimension_semantics = [#tpu.dimension_semantics<parallel>], iteration_bounds = array<i64: 1>, scalar_prefetch = 0 : i64, scratch_operands = 0 : i64, tpu.core_type = #tpu.core_type<tc>, window_params = [{transform_indices = @transform_0, window_bounds = array<i64: 1, 2048>}, {transform_indices = @transform_1, window_bounds = array<i64: 1, 2048>}]} {
    %c0 = arith.constant 0 : index
    %c0_0 = arith.constant 0 : index
    %0 = vector.load %arg1[%c0, %c0_0] : memref<1x2048xf32, #tpu.memory_space<vmem>>, vector<1x2048xf32>
    %cst = arith.constant -5.000000e-01 : f32
    %1 = vector.broadcast %cst : f32 to vector<1x2048xf32>
    %2 = arith.mulf %0, %1 : vector<1x2048xf32>
    %c0_1 = arith.constant 0 : index
    %c0_2 = arith.constant 0 : index
    %3 = vector.load %arg2[%c0_1, %c0_2] : memref<1x2048xf32, #tpu.memory_space<vmem>>, vector<1x2048xf32>
    tpu.vector_store %arg2[%c0_1, %c0_2], %2 {strides = array<i32>} : memref<1x2048xf32, #tpu.memory_space<vmem>>, vector<1x2048xf32>,
    return
  }
  func.func @transform_0(%arg0: i32) -> (i32, i32) {
    %c0_i32 = arith.constant 0 : i32
    %c0_i32_0 = arith.constant 0 : i32
    return %arg0, %c0_i32 : i32, i32
  }
  func.func @transform_1(%arg0: i32) -> (i32, i32) {
    %c0_i32 = arith.constant 0 : i32
    %c0_i32_0 = arith.constant 0 : i32
    return %arg0, %c0_i32 : i32, i32
  }
}

</mosaic_0001>

<llo_original>
// kernel: tpu_custom_call.1
$region0: #{tpu_custom_call.1}
  #allocation0 [shape = 'u32[]', space=smem, size = 0x4, offset = 0x4, fixed_abs, tag = 'smem constant byte address 0x4 - core index']
  #allocation1 [shape = 'u32[72,128]{1,0:T(1,128)}', space=vmem, size = 0x9000, scoped, tag = 'internal scratch']
  %s0 = inlined_call_operand.hbm [shape: f32[1,2048], index: 0, kind: input, shape index: {}, may-alias: {0,1}]
  %s1 = inlined_call_operand.hbm [shape: f32[1,2048], index: 1, kind: output, shape index: {}, may-alias: {0,1}]
  %s2 = sld [smem:[#allocation0]]
  $region18: #{tpu_custom_call.1} parent=0
    _
  %s4 = ssub.s32 1, %s2
  %s5 = scalar_select 0, %s4, %s2
  $region1: #{tpu_custom_call.1} parent=0
    #allocation2 [shape = 'u8[8192]{0}', space=vmem, size = 0x2000, scoped, tag = 'input window, operand 0, single buffered']
    #allocation3 [shape = 's32[1]{0}', space=sflag, size = 0x4, scoped, tag = 'scoped memory for tpu_custom_call.1']
    #allocation4 [shape = 's32[1]{0}', space=sflag, size = 0x4, scoped, tag = 'scoped memory for tpu_custom_call.1']
    #allocation5 [shape = 'u8[8192]{0}', space=vmem, size = 0x2000, scoped, tag = 'output window, operand 0, single buffered']
    %6 = vsyncpa [#allocation3], 0
    %7 = vsyncpa [#allocation4], 0
    // Predicated region
    $region2: #{tpu_custom_call.1} parent=1 // pred_check
      _
    $region3: #{tpu_custom_call.1} parent=1 // pred_check_branch
      %9 = sbr.rel (0) target = $region5
    $region4: #{tpu_custom_call.1} parent=1 // pred_region
      %11 = vsyncadd [#allocation3], 0
      %s13 = sshll.u32 %s0, 4
      %s14 = int_to_ptr.hbm [resolvable:$true] %s13
      %s15 = sshll.u32 [#allocation2], 4
      %s16 = int_to_ptr.vmem [resolvable:$true] %s15
      %18 = dma.hbm_to_vmem [thread:$0]  %s14, 256, %s16, [#allocation3]
    $region5: #{tpu_custom_call.1} parent=1 // pred_fallthru
      _
    // Predicated region
    $region6: #{tpu_custom_call.1} parent=1 // pred_check
      _
    $region7: #{tpu_custom_call.1} parent=1 // pred_check_branch
      %20 = sbr.rel (0) target = $region9
    $region8: #{tpu_custom_call.1} parent=1 // pred_region
      %22 = dma.done [#allocation3], 256
    $region9: #{tpu_custom_call.1} parent=1 // pred_fallthru
      _
    %v23 = vld [vmem:[#allocation2] sm:$0xff]
    %v24 = vld [vmem:[#allocation2 + $0x8] sm:$0xff]
    %v25 = vmul.f32 %v23, -0.5
    %v26 = vmul.f32 %v24, -0.5
    %27 = vst [vmem:[#allocation5] sm:$0xff] %v25
    %28 = vst [vmem:[#allocation5 + $0x8] sm:$0xff] %v26
    // Predicated region
    $region10: #{tpu_custom_call.1} parent=1 // pred_check
      _
    $region11: #{tpu_custom_call.1} parent=1 // pred_check_branch
      %30 = sbr.rel (0) target = $region13
    $region12: #{tpu_custom_call.1} parent=1 // pred_region
      %32 = vsyncadd [#allocation4], 0
      %s34 = sshll.u32 [#allocation5], 4
      %s35 = int_to_ptr.vmem [resolvable:$true] %s34
      %s36 = sshll.u32 %s1, 4
      %s37 = int_to_ptr.hbm [resolvable:$true] %s36
      %39 = dma.vmem_to_hbm [thread:$0]  %s35, 256, %s37, [#allocation4]
    $region13: #{tpu_custom_call.1} parent=1 // pred_fallthru
      _
    // Predicated region
    $region14: #{tpu_custom_call.1} parent=1 // pred_check
      _
    $region15: #{tpu_custom_call.1} parent=1 // pred_check_branch
      %41 = sbr.rel (0) target = $region17
    $region16: #{tpu_custom_call.1} parent=1 // pred_region
      %43 = dma.done [#allocation4], 256
    $region17: #{tpu_custom_call.1} parent=1 // pred_fallthru
      _
    %44 = vsyncpa [#allocation3], 1
    %45 = vsyncpa [#allocation4], 1

</llo_original>
